<compile_context>
chip_gen: v5e
topology: v5e:2x2
jax: 0.10.0
libtpu: 0.0.40
codegen_flags: <defaults>
</compile_context>

<pallas_src>
import jax
import jax.numpy as jnp
from jax.experimental import pallas as pl
from jax.experimental.pallas import tpu as pltpu


def _bfs_encoder_kernel(x_ref, h_ref, wx_ref, wh_ref, b_ref, o_ref):
    # x_ref : [TM, G]   grouped x values (G original rows per lane-dense row)
    # h_ref : [TM, L]   lane-dense tile of h, L = G * H
    # wx_ref: [G, L]    block-diagonal x weight (G copies of w_x)   -- resident
    # wh_ref: [L, L]    block-diagonal h weight (G copies of W_h)   -- resident
    # b_ref : [1, L]    bias tiled G times (f32)                    -- resident
    # o_ref : [TM, L]   f32 output tile (full-lane, unmasked stores)
    z = jnp.dot(h_ref[...], wh_ref[...], preferred_element_type=jnp.float32)
    z = z + jnp.dot(x_ref[...], wx_ref[...], preferred_element_type=jnp.float32)
    z = z + b_ref[...]                                   # f32 epilogue (v5e-safe)
    o_ref[...] = jnp.maximum(z, 0.0).astype(o_ref.dtype)


def bfs_encoder(x, h, weight, bias, *, tm_max=8192, compute_dtype=jnp.bfloat16):
    """relu(cat([x, h], -1) @ weight + bias).

    x: [N, 1] f32, h: [N, H] f32, weight: [1 + H, H] (transposed vs torch
    nn.Linear.weight), bias: [H].  Returns [N, H] f32.
    """
    n = x.shape[0]
    hidden = h.shape[1]
    assert x.shape == (n, 1), x.shape
    assert weight.shape == (1 + hidden, hidden), weight.shape
    assert bias.shape == (hidden,), bias.shape

    # ---- Lane densification: pack G = 128 // H rows per 128-lane row. ----
    g = 128 // hidden if (hidden < 128 and 128 % hidden == 0) else 1
    lane = g * hidden

    # Pad N up to a multiple of the packing factor (output sliced back below).
    n_pad = ((n + g - 1) // g) * g
    if n_pad != n:
        pad = n_pad - n
        x = jnp.pad(x, ((0, pad), (0, 0)))
        h = jnp.pad(h, ((0, pad), (0, 0)))
    rows = n_pad // g

    # Free, contiguous lane-dense views + bf16 cast (halves HBM bytes).
    h_l = h.reshape(rows, lane).astype(compute_dtype)
    x_l = x.reshape(rows, g).astype(compute_dtype)

    # Split the weight so the concat never materializes, then block-diagonalize
    # so the lane-dense views multiply against it directly.
    w_x = weight[0:1, :]                                  # [1, H]
    w_h = weight[1:, :]                                   # [H, H]
    eye = jnp.eye(g, dtype=weight.dtype)
    wh_big = jnp.kron(eye, w_h).astype(compute_dtype)     # [L, L] block-diag
    wx_big = jnp.kron(eye, w_x).astype(compute_dtype)     # [G, L] block-diag
    b_big = jnp.tile(bias, g).reshape(1, lane).astype(jnp.float32)

    # ---- Row tiling over the lane-dense view. ----
    tm_max_rows = max(tm_max // g, 1)
    if rows > tm_max_rows:
        tm = max((tm_max_rows // 8) * 8, 8)
    else:
        # Split into >= 2 grid steps so both v7x TensorCores get work.
        tm = ((pl.cdiv(rows, 2) + 7) // 8) * 8
    if tm >= rows:
        tm = rows
    grid = (pl.cdiv(rows, tm),)

    in_bytes = jnp.dtype(compute_dtype).itemsize
    cost = pl.CostEstimate(
        flops=2 * n_pad * hidden * (hidden + 1),
        transcendentals=0,
        bytes_accessed=(in_bytes * (n_pad * (hidden + 1) + (lane + g) * lane)
                        + 4 * (lane + n_pad * hidden)),
    )

    out = pl.pallas_call(
        _bfs_encoder_kernel,
        out_shape=jax.ShapeDtypeStruct((rows, lane), jnp.float32),
        grid_spec=pl.GridSpec(
            grid=grid,
            in_specs=[
                pl.BlockSpec((tm, g), lambda i: (i, 0)),          # x tile
                pl.BlockSpec((tm, lane), lambda i: (i, 0)),       # h tile (lane dense)
                pl.BlockSpec((g, lane), lambda i: (0, 0)),        # w_x (resident)
                pl.BlockSpec((lane, lane), lambda i: (0, 0)),     # W_h (resident)
                pl.BlockSpec((1, lane), lambda i: (0, 0)),        # bias (resident)
            ],
            out_specs=pl.BlockSpec((tm, lane), lambda i: (i, 0)),
        ),
        compiler_params=pltpu.CompilerParams(
            dimension_semantics=("parallel",),     # independent row tiles (v7x 2-TC)
            vmem_limit_bytes=32 * 1024 * 1024,
        ),
        cost_estimate=cost,
    )(x_l, h_l, wx_big, wh_big, b_big)

    out = out.reshape(n_pad, hidden)
    if n_pad != n:
        out = out[:n]
    return out


if __name__ == "__main__":
    hidden_dim = 32
    key = jax.random.PRNGKey(0)
    kx, kh, kw, kb = jax.random.split(key, 4)

    # Deterministic parameters, mimicking nn.Linear's uniform(+-1/sqrt(fan_in)).
    fan_in = 1 + hidden_dim
    bound = 1.0 / float(fan_in) ** 0.5
    weight = jax.random.uniform(kw, (fan_in, hidden_dim), jnp.float32, -bound, bound)
    bias = jax.random.uniform(kb, (hidden_dim,), jnp.float32, -bound, bound)

    def ref_fn(x, h):  # pure-JAX reference of the torch module's math
        return jnp.maximum(jnp.concatenate([x, h], axis=-1) @ weight + bias, 0.0)

    # Case 1: small tile so the demo exercises a multi-step grid (4 steps).
    n1 = 256
    x1 = jax.random.normal(kx, (n1, 1), jnp.float32)
    h1 = jax.random.normal(kh, (n1, hidden_dim), jnp.float32)
    out1 = jax.block_until_ready(bfs_encoder(x1, h1, weight, bias, tm_max=64))
    assert out1.shape == (n1, hidden_dim)
    # bf16 inputs -> loosened tolerance vs the f32 reference.
    assert jnp.allclose(out1, ref_fn(x1, h1), atol=3e-2, rtol=3e-2)

    # Case 2: N not a multiple of the packing factor, default tile -> exercises
    # the pad/slice path, the >=2-grid-step split and the partial last tile.
    n2 = 101
    kx2, kh2 = jax.random.split(kx)
    x2 = jax.random.normal(kx2, (n2, 1), jnp.float32)
    h2 = jax.random.normal(kh2, (n2, hidden_dim), jnp.float32)
    out2 = jax.block_until_ready(bfs_encoder(x2, h2, weight, bias))
    assert out2.shape == (n2, hidden_dim)
    assert jnp.allclose(out2, ref_fn(x2, h2), atol=3e-2, rtol=3e-2)

    print("KERNEL_OK")
</pallas_src>

<mosaic_0001>
module attributes {stable_mosaic.version = 11 : i64} {
  func.func @_bfs_encoder_kernel(%arg0: i32, %arg1: memref<16x4xbf16, #tpu.memory_space<vmem>>, %arg2: memref<16x128xbf16, #tpu.memory_space<vmem>>, %arg3: memref<4x128xbf16, #tpu.memory_space<vmem>>, %arg4: memref<128x128xbf16, #tpu.memory_space<vmem>>, %arg5: memref<1x128xf32, #tpu.memory_space<vmem>>, %arg6: memref<16x128xf32, #tpu.memory_space<vmem>>) attributes {dimension_semantics = [#tpu.dimension_semantics<parallel>], iteration_bounds = array<i64: 4>, scalar_prefetch = 0 : i64, scratch_operands = 0 : i64, tpu.core_type = #tpu.core_type<tc>, window_params = [{transform_indices = @transform_0, window_bounds = array<i64: 16, 4>}, {transform_indices = @transform_1, window_bounds = array<i64: 16, 128>}, {pipeline_mode = #tpu.pipeline_mode<synchronous>, transform_indices = @transform_2, window_bounds = array<i64: 4, 128>}, {pipeline_mode = #tpu.pipeline_mode<synchronous>, transform_indices = @transform_3, window_bounds = array<i64: 128, 128>}, {pipeline_mode = #tpu.pipeline_mode<synchronous>, transform_indices = @transform_4, window_bounds = array<i64: 1, 128>}, {transform_indices = @transform_5, window_bounds = array<i64: 16, 128>}]} {
    %c0 = arith.constant 0 : index
    %c0_0 = arith.constant 0 : index
    %0 = vector.load %arg2[%c0, %c0_0] : memref<16x128xbf16, #tpu.memory_space<vmem>>, vector<16x128xbf16>
    %c0_1 = arith.constant 0 : index
    %c0_2 = arith.constant 0 : index
    %1 = vector.load %arg4[%c0_1, %c0_2] : memref<128x128xbf16, #tpu.memory_space<vmem>>, vector<128x128xbf16>
    %cst = arith.constant dense<0.000000e+00> : vector<16x128xf32>
    %2 = tpu.matmul %0, %1, %cst {dimension_numbers = #tpu.dot_dimension_numbers<[1], [0], [0], [1], [0, 0, 1, 1], [], []>} : vector<16x128xbf16>, vector<128x128xbf16>, vector<16x128xf32> -> vector<16x128xf32>
    %c0_3 = arith.constant 0 : index
    %c0_4 = arith.constant 0 : index
    %3 = vector.load %arg1[%c0_3, %c0_4] : memref<16x4xbf16, #tpu.memory_space<vmem>>, vector<16x4xbf16>
    %c0_5 = arith.constant 0 : index
    %c0_6 = arith.constant 0 : index
    %4 = vector.load %arg3[%c0_5, %c0_6] : memref<4x128xbf16, #tpu.memory_space<vmem>>, vector<4x128xbf16>
    %cst_7 = arith.constant dense<0.000000e+00> : vector<16x128xf32>
    %5 = tpu.matmul %3, %4, %cst_7 {dimension_numbers = #tpu.dot_dimension_numbers<[1], [0], [0], [1], [0, 0, 1, 1], [], []>} : vector<16x4xbf16>, vector<4x128xbf16>, vector<16x128xf32> -> vector<16x128xf32>
    %6 = arith.addf %2, %5 : vector<16x128xf32>
    %c0_8 = arith.constant 0 : index
    %c0_9 = arith.constant 0 : index
    %7 = vector.load %arg5[%c0_8, %c0_9] : memref<1x128xf32, #tpu.memory_space<vmem>>, vector<1x128xf32>
    %8 = vector.broadcast %7 : vector<1x128xf32> to vector<16x128xf32>
    %9 = arith.addf %6, %8 : vector<16x128xf32>
    %cst_10 = arith.constant 0.000000e+00 : f32
    %10 = vector.broadcast %cst_10 : f32 to vector<16x128xf32>
    %11 = arith.maximumf %9, %10 : vector<16x128xf32>
    %c0_11 = arith.constant 0 : index
    %c0_12 = arith.constant 0 : index
    %12 = vector.load %arg6[%c0_11, %c0_12] : memref<16x128xf32, #tpu.memory_space<vmem>>, vector<16x128xf32>
    tpu.vector_store %arg6[%c0_11, %c0_12], %11 {strides = array<i32>} : memref<16x128xf32, #tpu.memory_space<vmem>>, vector<16x128xf32>,
    return
  }
  func.func @transform_0(%arg0: i32) -> (i32, i32) {
    %c0_i32 = arith.constant 0 : i32
    %c0_i32_0 = arith.constant 0 : i32
    return %arg0, %c0_i32 : i32, i32
  }
  func.func @transform_1(%arg0: i32) -> (i32, i32) {
    %c0_i32 = arith.constant 0 : i32
    %c0_i32_0 = arith.constant 0 : i32
    return %arg0, %c0_i32 : i32, i32
  }
  func.func @transform_2(%arg0: i32) -> (i32, i32) {
    %c0_i32 = arith.constant 0 : i32
    %c0_i32_0 = arith.constant 0 : i32
    %c0_i32_1 = arith.constant 0 : i32
    return %c0_i32, %c0_i32_0 : i32, i32
  }
  func.func @transform_3(%arg0: i32) -> (i32, i32) {
    %c0_i32 = arith.constant 0 : i32
    %c0_i32_0 = arith.constant 0 : i32
    %c0_i32_1 = arith.constant 0 : i32
    return %c0_i32, %c0_i32_0 : i32, i32
  }
  func.func @transform_4(%arg0: i32) -> (i32, i32) {
    %c0_i32 = arith.constant 0 : i32
    %c0_i32_0 = arith.constant 0 : i32
    %c0_i32_1 = arith.constant 0 : i32
    return %c0_i32, %c0_i32_0 : i32, i32
  }
  func.func @transform_5(%arg0: i32) -> (i32, i32) {
    %c0_i32 = arith.constant 0 : i32
    %c0_i32_0 = arith.constant 0 : i32
    return %arg0, %c0_i32 : i32, i32
  }
}

</mosaic_0001>

<llo_original>
// kernel: tpu_custom_call.1
$region0: #{tpu_custom_call.1}
  #allocation0 [shape = 'u32[]', space=smem, size = 0x4, offset = 0x4, fixed_abs, tag = 'smem constant byte address 0x4 - core index']
  #allocation1 [shape = 'u32[72,128]{1,0:T(1,128)}', space=vmem, size = 0x9000, scoped, tag = 'internal scratch']
  %s0 = inlined_call_operand.vmem [shape: bf16[64,4], index: 0, kind: input, shape index: {}]
  %s1 = inlined_call_operand.vmem [shape: bf16[64,128], index: 1, kind: input, shape index: {}]
  %s2 = inlined_call_operand.vmem [shape: bf16[4,128], index: 2, kind: input, shape index: {}]
  %s3 = inlined_call_operand.hbm [shape: bf16[128,128], index: 3, kind: input, shape index: {}]
  %s4 = inlined_call_operand.vmem [shape: f32[1,128], index: 4, kind: input, shape index: {}]
  %s5 = inlined_call_operand.hbm [shape: f32[64,128], index: 5, kind: output, shape index: {}]
  %s6 = sld [smem:[#allocation0]]
  $region57: #{tpu_custom_call.1} parent=0
    _
  %s8 = ssub.s32 1, %s6
  %s9 = scalar_select 0, %s8, %s6
  $region1: #{tpu_custom_call.1} parent=0
    #allocation2 [shape = 'u8[32768]{0}', space=vmem, size = 0x8000, scoped, tag = 'input window, operand 3, single buffered']
    #allocation3 [shape = 's32[2]{0}', space=sflag, size = 0x8, scoped, tag = 'scoped memory for tpu_custom_call.1']
    #allocation4 [shape = 's32[2]{0}', space=sflag, size = 0x8, scoped, tag = 'scoped memory for tpu_custom_call.1']
    #allocation5 [shape = 'u8[16384]{0}', space=vmem, size = 0x4000, scoped, tag = 'output window, operand 0']
    %10 = vsyncpa [#allocation3], 0
    %11 = vsyncpa [#allocation4], 0
    %s12 = scalar_lea.sflag [#allocation4], 1
    %13 = vsyncpa %s12, 0
    loop: start=0, step=1, limit=6
    $region2: #{tpu_custom_call.1} parent=1 // loop_pre_header
      _
    $region3: #{tpu_custom_call.1} parent=1 // loop_header
      %s15 = sphi 0, %s19
      %p16 = scmp.ge.s32.totalorder %s15, 6
      %s25 = sphi 0, %s27
      %s28 = sphi 0, %s25
      %s29 = sphi 0, %s28
      %s45 = sphi 0, %s29
      %s51 = sphi 0, %s53
      %s54 = sphi 0, %s51
      %s55 = sphi 0, %s54
      %s71 = sphi 0, %s55
      %s75 = sphi 0, %s75
      %s77 = sphi 0, %s75
      %s78 = sphi 0, %s77
      %s92 = sphi 0, %s78
      %s96 = sphi 0, %s96
      %s98 = sphi 0, %s96
      %s99 = sphi 0, %s98
      %s113 = sphi 0, %s99
      %s117 = sphi 0, %s117
      %s119 = sphi 0, %s117
      %s120 = sphi 0, %s119
      %s134 = sphi 0, %s120
      %s140 = sphi 0, %s142
      %s143 = sphi 0, %s140
      %s144 = sphi 0, %s143
      %s160 = sphi 0, %s144
    $region4: #{tpu_custom_call.1} parent=1 // loop_header_branch
      %18 = sbr.rel (%p16) target = $region8
    $region5: #{tpu_custom_call.1} parent=1 // loop_body
      %s20 = ssub.s32 %s15, 1
      %s21 = ssub.s32 %s15, 2
      %s22 = sadd.s32 %s15, 1
      %s23 = ssub.s32 %s15, %s22
      %p24 = scmp.eq.s32.totalorder %s23, 0
      %s26 = sadd.s32 %s25, 1
      %s27 = scalar_select %p24, %s25, %s26
      %p30 = pneg %p24
      %p31 = scmp.eq.s32.totalorder %s15, 3
      %p32 = por %p30, %p31
      %p33 = scmp.ne.s32.totalorder %s25, %s28
      %p34 = scmp.eq.s32.totalorder %s15, 0
      %p35 = por %p33, %p34
      %p36 = scmp.ne.s32.totalorder %s25, %s28
      %p37 = scmp.eq.s32.totalorder %s20, 3
      %p38 = por %p36, %p37
      %p39 = scmp.ne.s32.totalorder %s28, %s29
      %p40 = scmp.eq.s32.totalorder %s20, 0
      %p41 = por %p39, %p40
      %p42 = scmp.ne.s32.totalorder %s28, %s29
      %p43 = scmp.eq.s32.totalorder %s21, 3
      %p44 = por %p42, %p43
      %p46 = scmp.ne.s32.totalorder %s29, %s45
      %p47 = scmp.eq.s32.totalorder %s21, 0
      %p48 = por %p46, %p47
      %s49 = ssub.s32 %s15, %s22
      %p50 = scmp.eq.s32.totalorder %s49, 0
      %s52 = sadd.s32 %s51, 1
      %s53 = scalar_select %p50, %s51, %s52
      %p56 = pneg %p50
      %p57 = scmp.eq.s32.totalorder %s15, 3
      %p58 = por %p56, %p57
      %p59 = scmp.ne.s32.totalorder %s51, %s54
      %p60 = scmp.eq.s32.totalorder %s15, 0
      %p61 = por %p59, %p60
      %p62 = scmp.ne.s32.totalorder %s51, %s54
      %p63 = scmp.eq.s32.totalorder %s20, 3
      %p64 = por %p62, %p63
      %p65 = scmp.ne.s32.totalorder %s54, %s55
      %p66 = scmp.eq.s32.totalorder %s20, 0
      %p67 = por %p65, %p66
      %p68 = scmp.ne.s32.totalorder %s54, %s55
      %p69 = scmp.eq.s32.totalorder %s21, 3
      %p70 = por %p68, %p69
      %p72 = scmp.ne.s32.totalorder %s55, %s71
      %p73 = scmp.eq.s32.totalorder %s21, 0
      %p74 = por %p72, %p73
      %s76 = sadd.s32 %s75, 1
      %p79 = scmp.eq.s32.totalorder %s15, 3
      %p80 = scmp.ne.s32.totalorder %s75, %s77
      %p81 = scmp.eq.s32.totalorder %s15, 0
      %p82 = por %p80, %p81
      %p83 = scmp.ne.s32.totalorder %s75, %s77
      %p84 = scmp.eq.s32.totalorder %s20, 3
      %p85 = por %p83, %p84
      %p86 = scmp.ne.s32.totalorder %s77, %s78
      %p87 = scmp.eq.s32.totalorder %s20, 0
      %p88 = por %p86, %p87
      %p89 = scmp.ne.s32.totalorder %s77, %s78
      %p90 = scmp.eq.s32.totalorder %s21, 3
      %p91 = por %p89, %p90
      %p93 = scmp.ne.s32.totalorder %s78, %s92
      %p94 = scmp.eq.s32.totalorder %s21, 0
      %p95 = por %p93, %p94
      %s97 = sadd.s32 %s96, 1
      %p100 = scmp.eq.s32.totalorder %s15, 3
      %p101 = scmp.ne.s32.totalorder %s96, %s98
      %p102 = scmp.eq.s32.totalorder %s15, 0
      %p103 = por %p101, %p102
      %p104 = scmp.ne.s32.totalorder %s96, %s98
      %p105 = scmp.eq.s32.totalorder %s20, 3
      %p106 = por %p104, %p105
      %p107 = scmp.ne.s32.totalorder %s98, %s99
      %p108 = scmp.eq.s32.totalorder %s20, 0
      %p109 = por %p107, %p108
      %p110 = scmp.ne.s32.totalorder %s98, %s99
      %p111 = scmp.eq.s32.totalorder %s21, 3
      %p112 = por %p110, %p111
      %p114 = scmp.ne.s32.totalorder %s99, %s113
      %p115 = scmp.eq.s32.totalorder %s21, 0
      %p116 = por %p114, %p115
      %s118 = sadd.s32 %s117, 1
      %p121 = scmp.eq.s32.totalorder %s15, 3
      %p122 = scmp.ne.s32.totalorder %s117, %s119
      %p123 = scmp.eq.s32.totalorder %s15, 0
      %p124 = por %p122, %p123
      %p125 = scmp.ne.s32.totalorder %s117, %s119
      %p126 = scmp.eq.s32.totalorder %s20, 3
      %p127 = por %p125, %p126
      %p128 = scmp.ne.s32.totalorder %s119, %s120
      %p129 = scmp.eq.s32.totalorder %s20, 0
      %p130 = por %p128, %p129
      %p131 = scmp.ne.s32.totalorder %s119, %s120
      %p132 = scmp.eq.s32.totalorder %s21, 3
      %p133 = por %p131, %p132
      %p135 = scmp.ne.s32.totalorder %s120, %s134
      %p136 = scmp.eq.s32.totalorder %s21, 0
      %p137 = por %p135, %p136
      %s138 = ssub.s32 %s15, %s22
      %p139 = scmp.eq.s32.totalorder %s138, 0
      %s141 = sadd.s32 %s140, 1
      %s142 = scalar_select %p139, %s140, %s141
      %p145 = pneg %p139
      %p146 = scmp.eq.s32.totalorder %s15, 3
      %p147 = por %p145, %p146
      %p148 = scmp.ne.s32.totalorder %s140, %s143
      %p149 = scmp.eq.s32.totalorder %s15, 0
      %p150 = por %p148, %p149
      %p151 = scmp.ne.s32.totalorder %s140, %s143
      %p152 = scmp.eq.s32.totalorder %s20, 3
      %p153 = por %p151, %p152
      %p154 = scmp.ne.s32.totalorder %s143, %s144
      %p155 = scmp.eq.s32.totalorder %s20, 0
      %p156 = por %p154, %p155
      %p157 = scmp.ne.s32.totalorder %s143, %s144
      %p158 = scmp.eq.s32.totalorder %s21, 3
      %p159 = por %p157, %p158
      %p161 = scmp.ne.s32.totalorder %s144, %s160
      %p162 = scmp.eq.s32.totalorder %s21, 0
      %p163 = por %p161, %p162
      %p164 = scmp.le.s32.totalorder 1, %s15
      %p165 = scmp.lt.s32.totalorder %s15, 5
      %p166 = pnand %p164, %p165
      %p167 = pneg %p166
      // Predicated region
      $region9: #{tpu_custom_call.1} parent=5 // pred_check
        _
      $region10: #{tpu_custom_call.1} parent=5 // pred_check_branch
        %169 = sbr.rel (%p166) target = $region12
      $region11: #{tpu_custom_call.1} parent=5 // pred_region
        %s170 = ssub.s32 %s15, 1
        // Predicated region
        $region13: #{tpu_custom_call.1} parent=11 // pred_check
          %p171 = pneg %p88
        $region14: #{tpu_custom_call.1} parent=11 // pred_check_branch
          %173 = sbr.rel (%p171) target = $region16
        $region15: #{tpu_custom_call.1} parent=11 // pred_region
          _
        $region16: #{tpu_custom_call.1} parent=11 // pred_fallthru
          _
        // Predicated region
        $region17: #{tpu_custom_call.1} parent=11 // pred_check
          %p174 = pneg %p109
        $region18: #{tpu_custom_call.1} parent=11 // pred_check_branch
          %176 = sbr.rel (%p174) target = $region20
        $region19: #{tpu_custom_call.1} parent=11 // pred_region
          %178 = vsyncadd [#allocation3], 0
          %s179 = sshll.u32 %s3, 4
          %s180 = int_to_ptr.hbm [resolvable:$true] %s179
          %s181 = sshll.u32 [#allocation2], 4
          %s182 = int_to_ptr.vmem [resolvable:$true] %s181
          %187 = dma.hbm_to_vmem [thread:$0]  %s180, 1024, %s182, [#allocation3], 64, 64, 4
        $region20: #{tpu_custom_call.1} parent=11 // pred_fallthru
          _
        // Predicated region
        $region21: #{tpu_custom_call.1} parent=11 // pred_check
          %p188 = pneg %p130
        $region22: #{tpu_custom_call.1} parent=11 // pred_check_branch
          %190 = sbr.rel (%p188) target = $region24
        $region23: #{tpu_custom_call.1} parent=11 // pred_region
          _
        $region24: #{tpu_custom_call.1} parent=11 // pred_fallthru
          _
      $region12: #{tpu_custom_call.1} parent=5 // pred_fallthru
        _
      %p191 = scmp.lt.s32.totalorder %s15, 4
      // Predicated region
      $region25: #{tpu_custom_call.1} parent=5 // pred_check
        %p192 = pneg %p191
      $region26: #{tpu_custom_call.1} parent=5 // pred_check_branch
        %194 = sbr.rel (%p192) target = $region28
      $region27: #{tpu_custom_call.1} parent=5 // pred_region
        // Predicated region
        $region29: #{tpu_custom_call.1} parent=27 // pred_check
          %p195 = pneg %p35
        $region30: #{tpu_custom_call.1} parent=27 // pred_check_branch
          %197 = sbr.rel (%p195) target = $region32
        $region31: #{tpu_custom_call.1} parent=27 // pred_region
          %s198 = smul.u32 2, %s15
          %p199 = scmp.lt.s32.totalorder %s198, 7
          %s200 = scalar_select %p199, %s198, 7
          %s201 = smul.addr %s200, 4
          %s202 = scalar_lea.vmem %s0, %s201
          %s203 = smul.u32 2, %s15
        $region32: #{tpu_custom_call.1} parent=27 // pred_fallthru
          _
        // Predicated region
        $region33: #{tpu_custom_call.1} parent=27 // pred_check
          %p204 = pneg %p61
        $region34: #{tpu_custom_call.1} parent=27 // pred_check_branch
          %206 = sbr.rel (%p204) target = $region36
        $region35: #{tpu_custom_call.1} parent=27 // pred_region
          %s207 = smul.u32 2, %s15
          %p208 = scmp.lt.s32.totalorder %s207, 7
          %s209 = scalar_select %p208, %s207, 7
          %s210 = smul.addr %s209, 4
          %s211 = scalar_lea.vmem %s1, %s210
          %s212 = smul.u32 2, %s15
        $region36: #{tpu_custom_call.1} parent=27 // pred_fallthru
          _
      $region28: #{tpu_custom_call.1} parent=5 // pred_fallthru
        _
      %p213 = scmp.le.s32.totalorder 1, %s15
      %p214 = scmp.lt.s32.totalorder %s15, 5
      %p215 = pnand %p213, %p214
      %p216 = pneg %p215
      // Predicated region
      $region37: #{tpu_custom_call.1} parent=5 // pred_check
        _
      $region38: #{tpu_custom_call.1} parent=5 // pred_check_branch
        %218 = sbr.rel (%p215) target = $region40
      $region39: #{tpu_custom_call.1} parent=5 // pred_region
        %s219 = ssub.s32 %s15, 1
        // Predicated region
        $region41: #{tpu_custom_call.1} parent=39 // pred_check
          %p220 = pneg %p109
        $region42: #{tpu_custom_call.1} parent=39 // pred_check_branch
          %222 = sbr.rel (%p220) target = $region44
        $region43: #{tpu_custom_call.1} parent=39 // pred_region
          %224 = dma.done [#allocation3], 1024
        $region44: #{tpu_custom_call.1} parent=39 // pred_fallthru
          _
        %s225 = smul.u32 2, %s20
        %p226 = scmp.lt.s32.totalorder %s225, 7
        %s227 = scalar_select %p226, %s225, 7
        %s228 = smul.addr %s227, 4
        %s229 = scalar_lea.vmem %s0, %s228
        %p230 = pneg %p41
        %p231 = pneg %p38
        %s232 = smul.u32 2, %s20
        %p233 = scmp.lt.s32.totalorder %s232, 7
        %s234 = scalar_select %p233, %s232, 7
        %s235 = smul.addr %s234, 4
        %s236 = scalar_lea.vmem %s1, %s235
        %p237 = pneg %p67
        %p238 = pneg %p64
        %p239 = pneg %p88
        %p240 = pneg %p85
        %p241 = pneg %p109
        %p242 = pneg %p106
        %p243 = pneg %p130
        %p244 = pneg %p127
        %p245 = pneg %p156
        %p246 = pneg %p153
        %s247 = sand.u32 %s143, 1
        %s248 = scalar_lea.sflag [#allocation4], %s247
        %s249 = sand.u32 %s143, 1
        %s250 = smul.addr %s249, 16
        %s251 = scalar_lea.vmem [#allocation5], %s250
        %s252 = smul.u32 2, %s20
        %p253 = scmp.lt.s32.totalorder %s252, 7
        %s254 = scalar_select %p253, %s252, 7
        %s255 = smul.addr %s254, 4
        %s256 = scalar_lea.vmem %s0, %s255
        %s257 = smul.u32 2, %s20
        %s258 = smul.u32 2, %s20
        %p259 = scmp.lt.s32.totalorder %s258, 7
        %s260 = scalar_select %p259, %s258, 7
        %s261 = smul.addr %s260, 4
        %s262 = scalar_lea.vmem %s1, %s261
        %s263 = smul.u32 2, %s20
        %s264 = smul.u32 2, %s20
        %v266 = vld [vmem:[%s262] sm:$0xf]
        %v267 = vld [vmem:[%s262 + $0x4] sm:$0xf]
        %v268 = vld [vmem:[#allocation2] sm:$0xf]
        %v269 = vld [vmem:[#allocation2 + $0x4] sm:$0xf]
        %v270 = vld [vmem:[#allocation2 + $0x8] sm:$0xf]
        %v271 = vld [vmem:[#allocation2 + $0xc] sm:$0xf]
        %v272 = vld [vmem:[#allocation2 + $0x10] sm:$0xf]
        %v273 = vld [vmem:[#allocation2 + $0x14] sm:$0xf]
        %v274 = vld [vmem:[#allocation2 + $0x18] sm:$0xf]
        %v275 = vld [vmem:[#allocation2 + $0x1c] sm:$0xf]
        %v276 = vld [vmem:[#allocation2 + $0x20] sm:$0xf]
        %v277 = vld [vmem:[#allocation2 + $0x24] sm:$0xf]
        %v278 = vld [vmem:[#allocation2 + $0x28] sm:$0xf]
        %v279 = vld [vmem:[#allocation2 + $0x2c] sm:$0xf]
        %v280 = vld [vmem:[#allocation2 + $0x30] sm:$0xf]
        %v281 = vld [vmem:[#allocation2 + $0x34] sm:$0xf]
        %v282 = vld [vmem:[#allocation2 + $0x38] sm:$0xf]
        %v283 = vld [vmem:[#allocation2 + $0x3c] sm:$0xf]
        %v284 = vld [vmem:[%s256] sm:$0xf]
        %v285 = vld [vmem:[%s256 + $0x4] sm:$0xf]
        %v286 = vld [vmem:[%s2] sm:$0x3]
        %v289 = vunpack.c.l.b16 %v284
        %v290 = vunpack.c.l.b16 %v285
        %v291 = vpack.c.b16 %v290, %v289
        %vm292 = vcmask 31744
        %v294 = vsel %vm292, %v291, 0
        %vm296 = vcmask 1041408
        %v298 = vsel %vm296, %v286, 0
        %300 = vmatpush.bf16.msra.mxu0 0
        %301 = vmatpush.bf16.msra.mxu0 0
        %302 = vmatpush.bf16.msra.mxu0 0
        %303 = vmatpush.bf16.msra.mxu0 0
        %304 = vmatpush.bf16.msra.mxu0 0
        %305 = vmatpush.bf16.msra.mxu0 0
        %306 = vmatpush.bf16.msra.mxu0 0
        %307 = vmatpush.bf16.msra.mxu0 %v298
        %308 = vmatmul.bf16.gmra.mxu0 %v294
        %v309 = vpop.f32.mrf.mxu0
        %v310 = vadd.f32 0.0, %v309
        %v311 = vpop.f32.mrf.mxu0
        %v312 = vadd.f32 0.0, %v311
        %313 = vdwg.mxu0
        %v316 = vunpack.c.l.b16 %v266
        %v317 = vunpack.c.l.b16 %v267
        %v318 = vpack.c.b16 %v317, %v316
        %v336 = vunpack.c.l.b16 %v268
        %v337 = vunpack.c.l.b16 %v269
        %v338 = vunpack.c.l.b16 %v270
        %v339 = vunpack.c.l.b16 %v271
        %v340 = vunpack.c.l.b16 %v272
        %v341 = vunpack.c.l.b16 %v273
        %v342 = vunpack.c.l.b16 %v274
        %v343 = vunpack.c.l.b16 %v275
        %v344 = vunpack.c.l.b16 %v276
        %v345 = vunpack.c.l.b16 %v277
        %v346 = vunpack.c.l.b16 %v278
        %v347 = vunpack.c.l.b16 %v279
        %v348 = vunpack.c.l.b16 %v280
        %v349 = vunpack.c.l.b16 %v281
        %v350 = vunpack.c.l.b16 %v282
        %v351 = vunpack.c.l.b16 %v283
        %v352 = vpack.c.b16 %v337, %v336
        %v353 = vpack.c.b16 %v339, %v338
        %v354 = vpack.c.b16 %v341, %v340
        %v355 = vpack.c.b16 %v343, %v342
        %v356 = vpack.c.b16 %v345, %v344
        %v357 = vpack.c.b16 %v347, %v346
        %v358 = vpack.c.b16 %v349, %v348
        %v359 = vpack.c.b16 %v351, %v350
        %368 = vmatpush.bf16.msra.mxu0 %v359
        %369 = vmatpush.bf16.msra.mxu0 %v358
        %370 = vmatpush.bf16.msra.mxu0 %v357
        %371 = vmatpush.bf16.msra.mxu0 %v356
        %372 = vmatpush.bf16.msra.mxu0 %v355
        %373 = vmatpush.bf16.msra.mxu0 %v354
        %374 = vmatpush.bf16.msra.mxu0 %v353
        %375 = vmatpush.bf16.msra.mxu0 %v352
        %376 = vmatmul.bf16.gmra.mxu0 %v318
        %v377 = vpop.f32.mrf.mxu0
        %v378 = vadd.f32 %v310, %v377
        %v379 = vpop.f32.mrf.mxu0
        %v380 = vadd.f32 %v312, %v379
        %381 = vdwg.mxu0
        %v382 = vld [vmem:[%s4] sm:$0x1]
        %v384 = vperm.slane %v382, 0
        %v386 = vadd.f32 %v378, %v384
        %v387 = vadd.f32 %v380, %v384
        %v388 = vmax.f32 %v386, 0.0
        %v389 = vmax.f32 %v387, 0.0
        %390 = vst [vmem:[%s251] sm:$0xff] %v388
        %391 = vst [vmem:[%s251 + $0x8] sm:$0xff] %v389
        %s392 = sand.u32 %s143, 1
        %s393 = scalar_lea.sflag [#allocation4], %s392
        %s394 = sand.u32 %s143, 1
        %s395 = smul.addr %s394, 16
        %s396 = scalar_lea.vmem [#allocation5], %s395
        // Predicated region
        $region45: #{tpu_custom_call.1} parent=39 // pred_check
          %p397 = pneg %p153
        $region46: #{tpu_custom_call.1} parent=39 // pred_check_branch
          %399 = sbr.rel (%p397) target = $region48
        $region47: #{tpu_custom_call.1} parent=39 // pred_region
          %s400 = smul.u32 2, %s20
          %402 = vsyncadd %s393, 0
          %s403 = smul.addr %s400, 8
          %s404 = scalar_lea.hbm %s5, %s403
          %s405 = sshll.u32 %s396, 4
          %s406 = int_to_ptr.vmem [resolvable:$true] %s405
          %s407 = sshll.u32 %s404, 4
          %s408 = int_to_ptr.hbm [resolvable:$true] %s407
          %413 = dma.vmem_to_hbm [thread:$0]  %s406, 256, %s408, %s393, 128, 128, 8
        $region48: #{tpu_custom_call.1} parent=39 // pred_fallthru
          _
      $region40: #{tpu_custom_call.1} parent=5 // pred_fallthru
        _
      %p414 = scmp.le.s32.totalorder 2, %s15
      // Predicated region
      $region49: #{tpu_custom_call.1} parent=5 // pred_check
        %p415 = pneg %p414
      $region50: #{tpu_custom_call.1} parent=5 // pred_check_branch
        %417 = sbr.rel (%p415) target = $region52
      $region51: #{tpu_custom_call.1} parent=5 // pred_region
        %s418 = ssub.s32 %s15, 2
        // Predicated region
        $region53: #{tpu_custom_call.1} parent=51 // pred_check
          %p419 = pneg %p159
        $region54: #{tpu_custom_call.1} parent=51 // pred_check_branch
          %421 = sbr.rel (%p419) target = $region56
        $region55: #{tpu_custom_call.1} parent=51 // pred_region
          %s422 = sand.u32 %s144, 1
          %s423 = scalar_lea.sflag [#allocation4], %s422
          %s424 = sand.u32 %s144, 1
          %s425 = smul.addr %s424, 16
          %s426 = scalar_lea.vmem [#allocation5], %s425
          %428 = dma.done %s423, 256
        $region56: #{tpu_custom_call.1} parent=51 // pred_fallthru
          _
      $region52: #{tpu_custom_call.1} parent=5 // pred_fallthru
        _
    $region6: #{tpu_custom_call.1} parent=1 // loop_footer
      %s19 = sadd.s32 1, %s15
    $region7: #{tpu_custom_call.1} parent=1 // loop_footer_branch
      %14 = sbr.rel target = $region3
    $region8: #{tpu_custom_call.1} parent=1 // loop_exit
      _
    %429 = vsyncpa [#allocation3], 1
    %s430 = scalar_lea.sflag [#allocation3], 1
    %431 = vsyncpa %s430, 1
    %432 = vsyncpa [#allocation4], 1
    %s433 = scalar_lea.sflag [#allocation4], 1
    %434 = vsyncpa %s433, 1

</llo_original>
